<compile_context>
chip_gen: v6e
topology: v6e:2x2x1
jax: 0.10.0
libtpu: 0.0.40
codegen_flags: <defaults>
</compile_context>

<pallas_src>
import jax
import jax.numpy as jnp
from jax.experimental import pallas as pl
from jax.experimental.pallas import tpu as pltpu


def _lstm_fused_kernel(x_ref, w_ih_t_ref, w_pad_ref, b4_ref, w_out_ref,
                       b_out_ref, h0_ref, c0_ref,
                       y_ref, h_out_ref, c_out_ref):
    """Whole LSTMNet forward in a single kernel invocation.

    x_ref     : (B, T, I)   batch_first inputs
    w_ih_t_ref: (I, 4H)     input weights, gate columns [i|f|g|o]
    w_pad_ref : (4H, 4H)    W_hh^T in rows [3H:4H], all other rows zero
    b4_ref    : (1, 4H)     fused bias b_ih + b_hh
    w_out_ref : (1, H)      Linear head weight
    b_out_ref : (1, 1)      Linear head bias
    h0/c0_ref : (1, B, H)   initial states
    y_ref     : (B, 1)      head output
    h/c_out   : (1, B, H)   final states
    """
    B, T, I = x_ref.shape
    W4 = w_pad_ref.shape[0]
    H = W4 // 4
    f32 = jnp.float32

    # ---- Parallel part: input projection for all T steps as one GEMM -------
    x2d = x_ref[...].reshape(B * T, I)
    zx = jnp.dot(x2d, w_ih_t_ref[...], preferred_element_type=f32) + b4_ref[...]
    zx = zx.reshape(B, T, W4)                        # lane blocks [i|f|g|o]

    w_pad = w_pad_ref[...]                           # rows [3H:4H] = W_hh^T

    lane = jax.lax.broadcasted_iota(jnp.int32, (B, W4), 1)
    is_g = (lane >= 2 * H) & (lane < 3 * H)          # tanh gate block

    # Wide carries: c lives in lane block 1, h in lane block 3.  Other blocks
    # are don't-care: they stay finite and only meet zero rows of w_pad.
    zpad = jnp.zeros((B, H), f32)
    c_w = jnp.concatenate([zpad, c0_ref[0], zpad, zpad], axis=-1)   # (B, 4H)
    h_w = jnp.concatenate([zpad, zpad, zpad, h0_ref[0]], axis=-1)   # (B, 4H)

    # ---- Serial recurrence: one lane-dense MXU dot + whole-vreg gate math --
    for t in range(T):                               # small T -> static unroll
        z = zx[:, t, :] + jnp.dot(h_w, w_pad, preferred_element_type=f32)
        act = jnp.where(is_g, jnp.tanh(z), jax.nn.sigmoid(z))      # [i|f|g|o]
        # i*g duplicated into blocks 0 and 2 (a 2H roll is direction-symmetric).
        ig = act * pltpu.roll(act, 2 * H, axis=1)
        # Move a copy of i*g into block 1 (source blocks 0 and 2 both hold it,
        # so either rotate direction is correct).  Block 1: c' = f*c + i*g.
        c_w = act * c_w + pltpu.roll(ig, H, axis=1)
        # Bring c' to block 3 (where o lives).  Block 3: h' = o * tanh(c').
        h_w = act * jnp.tanh(pltpu.roll(c_w, 2 * H, axis=1))

    h_n = h_w[:, 3 * H:]                             # (B, H)
    c_n = c_w[:, H:2 * H]                            # (B, H)

    h_out_ref[...] = h_n.reshape(1, B, H)
    c_out_ref[...] = c_n.reshape(1, B, H)
    # Fused Linear(H -> 1) head: lane reduction of h_n against w_out.
    y_ref[...] = (jnp.sum(h_n * w_out_ref[...], axis=-1, keepdims=True)
                  + b_out_ref[...])


def prepare_params(params, hidden_size):
    """One-time parameter re-layout (outside the traced forward).

    PyTorch layout: w_ih (4H, I), w_hh (4H, H), gate order [i, f, g, o].
    """
    H = hidden_size
    w_ih_t = jnp.asarray(params["w_ih"], jnp.float32).T            # (I, 4H)
    w_hh_t = jnp.asarray(params["w_hh"], jnp.float32).T            # (H, 4H)
    # The kernel carries h in lane block 3, so W_hh^T occupies rows [3H:4H]
    # of the padded recurrent weight; all other rows are exactly zero.
    w_pad = jnp.zeros((4 * H, 4 * H), jnp.float32).at[3 * H:, :].set(w_hh_t)
    b4 = (params["b_ih"] + params["b_hh"]).reshape(1, 4 * H).astype(jnp.float32)
    return {
        "w_ih_t": w_ih_t,
        "w_pad": w_pad,
        "b4": b4,
        "w_out": jnp.asarray(params["w_out"], jnp.float32),        # (1, H)
        "b_out": jnp.asarray(params["b_out"], jnp.float32).reshape(1, 1),
    }


def lstm_net_forward(inputs, hidden_state, prepped):
    """Pallas implementation of LSTMNet.forward — exactly one pallas_call.

    inputs:       (B, T, I) float32 (batch_first)
    hidden_state: (h0, c0), each (num_layers=1, B, H)
    returns:      (outputs (B, 1), (h_n (1, B, H), c_n (1, B, H)))
    """
    h0, c0 = hidden_state
    B, T, _ = inputs.shape
    H = h0.shape[-1]

    vmem = pl.BlockSpec(memory_space=pltpu.MemorySpace.VMEM)
    y, h_n, c_n = pl.pallas_call(
        _lstm_fused_kernel,
        out_shape=(
            jax.ShapeDtypeStruct((B, 1), jnp.float32),
            jax.ShapeDtypeStruct((1, B, H), jnp.float32),
            jax.ShapeDtypeStruct((1, B, H), jnp.float32),
        ),
        in_specs=[vmem] * 8,
        out_specs=(vmem, vmem, vmem),
        compiler_params=pltpu.CompilerParams(
            vmem_limit_bytes=32 * 1024 * 1024),
    )(inputs, prepped["w_ih_t"], prepped["w_pad"], prepped["b4"],
      prepped["w_out"], prepped["b_out"], h0, c0)
    return y, (h_n, c_n)


def lstm_net_reference(inputs, hidden_state, params):
    """Pure-JAX reference (matches PyTorch nn.LSTM + Linear semantics)."""
    h0_l, c0_l = hidden_state
    h, c = h0_l[0], c0_l[0]
    H = h.shape[-1]
    wih_t, whh_t = params["w_ih"].T, params["w_hh"].T
    b = params["b_ih"] + params["b_hh"]

    def step(carry, x_t):
        h, c = carry
        z = x_t @ wih_t + h @ whh_t + b
        i_g = jax.nn.sigmoid(z[:, 0 * H:1 * H])
        f_g = jax.nn.sigmoid(z[:, 1 * H:2 * H])
        g_g = jnp.tanh(z[:, 2 * H:3 * H])
        o_g = jax.nn.sigmoid(z[:, 3 * H:4 * H])
        c_new = f_g * c + i_g * g_g
        h_new = o_g * jnp.tanh(c_new)
        return (h_new, c_new), None

    (h_n, c_n), _ = jax.lax.scan(step, (h, c), jnp.transpose(inputs, (1, 0, 2)))
    y = h_n @ params["w_out"].T + params["b_out"]
    return y, (h_n[None], c_n[None])


def init_params(key, input_size, hidden_size):
    """Deterministic PyTorch-style init: U(-1/sqrt(H), 1/sqrt(H))."""
    ks = jax.random.split(key, 6)
    bound = 1.0 / jnp.sqrt(hidden_size)
    u = lambda k, shp: jax.random.uniform(k, shp, jnp.float32, -bound, bound)
    return {
        "w_ih": u(ks[0], (4 * hidden_size, input_size)),
        "w_hh": u(ks[1], (4 * hidden_size, hidden_size)),
        "b_ih": u(ks[2], (4 * hidden_size,)),
        "b_hh": u(ks[3], (4 * hidden_size,)),
        "w_out": u(ks[4], (1, hidden_size)),
        "b_out": u(ks[5], (1,)),
    }


if __name__ == "__main__":
    B, T, I, H = 2, 8, 4, 32

    key = jax.random.PRNGKey(0)
    k_x, k_h, k_c, k_p = jax.random.split(key, 4)

    inputs = jax.random.normal(k_x, (B, T, I), jnp.float32)
    h0 = jax.random.normal(k_h, (1, B, H), jnp.float32)
    c0 = jax.random.normal(k_c, (1, B, H), jnp.float32)
    raw_params = init_params(k_p, I, H)
    prepped = prepare_params(raw_params, H)          # one-time weight re-layout

    fwd = jax.jit(lstm_net_forward)
    y, (h_n, c_n) = fwd(inputs, (h0, c0), prepped)
    jax.block_until_ready((y, h_n, c_n))

    y_ref, (h_ref, c_ref) = lstm_net_reference(inputs, (h0, c0), raw_params)
    assert y.shape == (B, 1) and h_n.shape == (1, B, H) and c_n.shape == (1, B, H)
    assert jnp.allclose(y, y_ref, atol=1e-5), "output mismatch vs reference"
    assert jnp.allclose(h_n, h_ref, atol=1e-5), "h_n mismatch vs reference"
    assert jnp.allclose(c_n, c_ref, atol=1e-5), "c_n mismatch vs reference"

    print("KERNEL_OK")
</pallas_src>

<mosaic_0001>
module attributes {stable_mosaic.version = 11 : i64} {
  func.func @_lstm_fused_kernel(%arg0: memref<2x8x4xf32, #tpu.memory_space<vmem>>, %arg1: memref<4x128xf32, #tpu.memory_space<vmem>>, %arg2: memref<128x128xf32, #tpu.memory_space<vmem>>, %arg3: memref<1x128xf32, #tpu.memory_space<vmem>>, %arg4: memref<1x32xf32, #tpu.memory_space<vmem>>, %arg5: memref<1x1xf32, #tpu.memory_space<vmem>>, %arg6: memref<1x2x32xf32, #tpu.memory_space<vmem>>, %arg7: memref<1x2x32xf32, #tpu.memory_space<vmem>>, %arg8: memref<2x1xf32, #tpu.memory_space<vmem>>, %arg9: memref<1x2x32xf32, #tpu.memory_space<vmem>>, %arg10: memref<1x2x32xf32, #tpu.memory_space<vmem>>) attributes {dimension_semantics = [], scalar_prefetch = 0 : i64, scratch_operands = 0 : i64, tpu.core_type = #tpu.core_type<tc>} {
    %c0 = arith.constant 0 : index
    %c0_0 = arith.constant 0 : index
    %c0_1 = arith.constant 0 : index
    %0 = vector.load %arg0[%c0, %c0_0, %c0_1] : memref<2x8x4xf32, #tpu.memory_space<vmem>>, vector<2x8x4xf32>
    %1 = vector.shape_cast %0 : vector<2x8x4xf32> to vector<16x4xf32>
    %c0_2 = arith.constant 0 : index
    %c0_3 = arith.constant 0 : index
    %2 = vector.load %arg1[%c0_2, %c0_3] : memref<4x128xf32, #tpu.memory_space<vmem>>, vector<4x128xf32>
    %cst = arith.constant dense<0.000000e+00> : vector<16x128xf32>
    %3 = tpu.matmul %1, %2, %cst {dimension_numbers = #tpu.dot_dimension_numbers<[1], [0], [0], [1], [0, 0, 1, 1], [], []>} : vector<16x4xf32>, vector<4x128xf32>, vector<16x128xf32> -> vector<16x128xf32>
    %c0_4 = arith.constant 0 : index
    %c0_5 = arith.constant 0 : index
    %4 = vector.load %arg3[%c0_4, %c0_5] : memref<1x128xf32, #tpu.memory_space<vmem>>, vector<1x128xf32>
    %5 = vector.broadcast %4 : vector<1x128xf32> to vector<16x128xf32>
    %6 = arith.addf %3, %5 : vector<16x128xf32>
    %7 = vector.shape_cast %6 : vector<16x128xf32> to vector<2x8x128xf32>
    %c0_6 = arith.constant 0 : index
    %c0_7 = arith.constant 0 : index
    %8 = vector.load %arg2[%c0_6, %c0_7] : memref<128x128xf32, #tpu.memory_space<vmem>>, vector<128x128xf32>
    %9 = tpu.iota {dimensions = array<i32: 1>} : vector<2x128xi32>
    %c64_i32 = arith.constant 64 : i32
    %10 = vector.broadcast %c64_i32 : i32 to vector<2x128xi32>
    %11 = arith.cmpi sge, %9, %10 : vector<2x128xi32>
    %c96_i32 = arith.constant 96 : i32
    %12 = vector.broadcast %c96_i32 : i32 to vector<2x128xi32>
    %13 = arith.cmpi slt, %9, %12 : vector<2x128xi32>
    %14 = arith.andi %11, %13 : vector<2x128xi1>
    %cst_8 = arith.constant 0.000000e+00 : f32
    %15 = vector.broadcast %cst_8 : f32 to vector<2x32xf32>
    %c0_9 = arith.constant 0 : index
    %c0_10 = arith.constant 0 : index
    %c0_11 = arith.constant 0 : index
    %16 = vector.load %arg7[%c0_9, %c0_10, %c0_11] : memref<1x2x32xf32, #tpu.memory_space<vmem>>, vector<1x2x32xf32>
    %17 = vector.shape_cast %16 : vector<1x2x32xf32> to vector<2x32xf32>
    %18 = tpu.concatenate %15, %17, %15, %15 in 1 : vector<2x32xf32>, vector<2x32xf32>, vector<2x32xf32>, vector<2x32xf32> -> vector<2x128xf32>
    %c0_12 = arith.constant 0 : index
    %c0_13 = arith.constant 0 : index
    %c0_14 = arith.constant 0 : index
    %19 = vector.load %arg6[%c0_12, %c0_13, %c0_14] : memref<1x2x32xf32, #tpu.memory_space<vmem>>, vector<1x2x32xf32>
    %20 = vector.shape_cast %19 : vector<1x2x32xf32> to vector<2x32xf32>
    %21 = tpu.concatenate %15, %15, %15, %20 in 1 : vector<2x32xf32>, vector<2x32xf32>, vector<2x32xf32>, vector<2x32xf32> -> vector<2x128xf32>
    %22 = vector.extract_strided_slice %7 {offsets = [0, 0, 0], sizes = [2, 1, 128], strides = [1, 1, 1]} : vector<2x8x128xf32> to vector<2x1x128xf32>
    %23 = vector.shape_cast %22 : vector<2x1x128xf32> to vector<2x128xf32>
    %cst_15 = arith.constant dense<0.000000e+00> : vector<2x128xf32>
    %24 = tpu.matmul %21, %8, %cst_15 {dimension_numbers = #tpu.dot_dimension_numbers<[1], [0], [0], [1], [0, 0, 1, 1], [], []>} : vector<2x128xf32>, vector<128x128xf32>, vector<2x128xf32> -> vector<2x128xf32>
    %25 = arith.addf %23, %24 : vector<2x128xf32>
    %26 = math.tanh %25 : vector<2x128xf32>
    %27 = arith.negf %25 : vector<2x128xf32>
    %28 = math.exp %27 : vector<2x128xf32>
    %cst_16 = arith.constant 1.000000e+00 : f32
    %29 = vector.broadcast %cst_16 : f32 to vector<2x128xf32>
    %30 = arith.addf %29, %28 : vector<2x128xf32>
    %31 = arith.divf %29, %30 : vector<2x128xf32>
    %32 = arith.select %14, %26, %31 : vector<2x128xi1>, vector<2x128xf32>
    %c64_i32_17 = arith.constant 64 : i32
    %33 = tpu.dynamic_rotate %32 by %c64_i32_17 dim 1 : vector<2x128xf32>, i32 -> vector<2x128xf32>
    %34 = arith.mulf %32, %33 : vector<2x128xf32>
    %35 = arith.mulf %32, %18 : vector<2x128xf32>
    %c32_i32 = arith.constant 32 : i32
    %36 = tpu.dynamic_rotate %34 by %c32_i32 dim 1 : vector<2x128xf32>, i32 -> vector<2x128xf32>
    %37 = arith.addf %35, %36 : vector<2x128xf32>
    %c64_i32_18 = arith.constant 64 : i32
    %38 = tpu.dynamic_rotate %37 by %c64_i32_18 dim 1 : vector<2x128xf32>, i32 -> vector<2x128xf32>
    %39 = math.tanh %38 : vector<2x128xf32>
    %40 = arith.mulf %32, %39 : vector<2x128xf32>
    %41 = vector.extract_strided_slice %7 {offsets = [0, 1, 0], sizes = [2, 1, 128], strides = [1, 1, 1]} : vector<2x8x128xf32> to vector<2x1x128xf32>
    %42 = vector.shape_cast %41 : vector<2x1x128xf32> to vector<2x128xf32>
    %cst_19 = arith.constant dense<0.000000e+00> : vector<2x128xf32>
    %43 = tpu.matmul %40, %8, %cst_19 {dimension_numbers = #tpu.dot_dimension_numbers<[1], [0], [0], [1], [0, 0, 1, 1], [], []>} : vector<2x128xf32>, vector<128x128xf32>, vector<2x128xf32> -> vector<2x128xf32>
    %44 = arith.addf %42, %43 : vector<2x128xf32>
    %45 = math.tanh %44 : vector<2x128xf32>
    %46 = arith.negf %44 : vector<2x128xf32>
    %47 = math.exp %46 : vector<2x128xf32>
    %cst_20 = arith.constant 1.000000e+00 : f32
    %48 = vector.broadcast %cst_20 : f32 to vector<2x128xf32>
    %49 = arith.addf %48, %47 : vector<2x128xf32>
    %50 = arith.divf %48, %49 : vector<2x128xf32>
    %51 = arith.select %14, %45, %50 : vector<2x128xi1>, vector<2x128xf32>
    %c64_i32_21 = arith.constant 64 : i32
    %52 = tpu.dynamic_rotate %51 by %c64_i32_21 dim 1 : vector<2x128xf32>, i32 -> vector<2x128xf32>
    %53 = arith.mulf %51, %52 : vector<2x128xf32>
    %54 = arith.mulf %51, %37 : vector<2x128xf32>
    %c32_i32_22 = arith.constant 32 : i32
    %55 = tpu.dynamic_rotate %53 by %c32_i32_22 dim 1 : vector<2x128xf32>, i32 -> vector<2x128xf32>
    %56 = arith.addf %54, %55 : vector<2x128xf32>
    %c64_i32_23 = arith.constant 64 : i32
    %57 = tpu.dynamic_rotate %56 by %c64_i32_23 dim 1 : vector<2x128xf32>, i32 -> vector<2x128xf32>
    %58 = math.tanh %57 : vector<2x128xf32>
    %59 = arith.mulf %51, %58 : vector<2x128xf32>
    %60 = vector.extract_strided_slice %7 {offsets = [0, 2, 0], sizes = [2, 1, 128], strides = [1, 1, 1]} : vector<2x8x128xf32> to vector<2x1x128xf32>
    %61 = vector.shape_cast %60 : vector<2x1x128xf32> to vector<2x128xf32>
    %cst_24 = arith.constant dense<0.000000e+00> : vector<2x128xf32>
    %62 = tpu.matmul %59, %8, %cst_24 {dimension_numbers = #tpu.dot_dimension_numbers<[1], [0], [0], [1], [0, 0, 1, 1], [], []>} : vector<2x128xf32>, vector<128x128xf32>, vector<2x128xf32> -> vector<2x128xf32>
    %63 = arith.addf %61, %62 : vector<2x128xf32>
    %64 = math.tanh %63 : vector<2x128xf32>
    %65 = arith.negf %63 : vector<2x128xf32>
    %66 = math.exp %65 : vector<2x128xf32>
    %cst_25 = arith.constant 1.000000e+00 : f32
    %67 = vector.broadcast %cst_25 : f32 to vector<2x128xf32>
    %68 = arith.addf %67, %66 : vector<2x128xf32>
    %69 = arith.divf %67, %68 : vector<2x128xf32>
    %70 = arith.select %14, %64, %69 : vector<2x128xi1>, vector<2x128xf32>
    %c64_i32_26 = arith.constant 64 : i32
    %71 = tpu.dynamic_rotate %70 by %c64_i32_26 dim 1 : vector<2x128xf32>, i32 -> vector<2x128xf32>
    %72 = arith.mulf %70, %71 : vector<2x128xf32>
    %73 = arith.mulf %70, %56 : vector<2x128xf32>
    %c32_i32_27 = arith.constant 32 : i32
    %74 = tpu.dynamic_rotate %72 by %c32_i32_27 dim 1 : vector<2x128xf32>, i32 -> vector<2x128xf32>
    %75 = arith.addf %73, %74 : vector<2x128xf32>
    %c64_i32_28 = arith.constant 64 : i32
    %76 = tpu.dynamic_rotate %75 by %c64_i32_28 dim 1 : vector<2x128xf32>, i32 -> vector<2x128xf32>
    %77 = math.tanh %76 : vector<2x128xf32>
    %78 = arith.mulf %70, %77 : vector<2x128xf32>
    %79 = vector.extract_strided_slice %7 {offsets = [0, 3, 0], sizes = [2, 1, 128], strides = [1, 1, 1]} : vector<2x8x128xf32> to vector<2x1x128xf32>
    %80 = vector.shape_cast %79 : vector<2x1x128xf32> to vector<2x128xf32>
    %cst_29 = arith.constant dense<0.000000e+00> : vector<2x128xf32>
    %81 = tpu.matmul %78, %8, %cst_29 {dimension_numbers = #tpu.dot_dimension_numbers<[1], [0], [0], [1], [0, 0, 1, 1], [], []>} : vector<2x128xf32>, vector<128x128xf32>, vector<2x128xf32> -> vector<2x128xf32>
    %82 = arith.addf %80, %81 : vector<2x128xf32>
    %83 = math.tanh %82 : vector<2x128xf32>
    %84 = arith.negf %82 : vector<2x128xf32>
    %85 = math.exp %84 : vector<2x128xf32>
    %cst_30 = arith.constant 1.000000e+00 : f32
    %86 = vector.broadcast %cst_30 : f32 to vector<2x128xf32>
    %87 = arith.addf %86, %85 : vector<2x128xf32>
    %88 = arith.divf %86, %87 : vector<2x128xf32>
    %89 = arith.select %14, %83, %88 : vector<2x128xi1>, vector<2x128xf32>
    %c64_i32_31 = arith.constant 64 : i32
    %90 = tpu.dynamic_rotate %89 by %c64_i32_31 dim 1 : vector<2x128xf32>, i32 -> vector<2x128xf32>
    %91 = arith.mulf %89, %90 : vector<2x128xf32>
    %92 = arith.mulf %89, %75 : vector<2x128xf32>
    %c32_i32_32 = arith.constant 32 : i32
    %93 = tpu.dynamic_rotate %91 by %c32_i32_32 dim 1 : vector<2x128xf32>, i32 -> vector<2x128xf32>
    %94 = arith.addf %92, %93 : vector<2x128xf32>
    %c64_i32_33 = arith.constant 64 : i32
    %95 = tpu.dynamic_rotate %94 by %c64_i32_33 dim 1 : vector<2x128xf32>, i32 -> vector<2x128xf32>
    %96 = math.tanh %95 : vector<2x128xf32>
    %97 = arith.mulf %89, %96 : vector<2x128xf32>
    %98 = vector.extract_strided_slice %7 {offsets = [0, 4, 0], sizes = [2, 1, 128], strides = [1, 1, 1]} : vector<2x8x128xf32> to vector<2x1x128xf32>
    %99 = vector.shape_cast %98 : vector<2x1x128xf32> to vector<2x128xf32>
    %cst_34 = arith.constant dense<0.000000e+00> : vector<2x128xf32>
    %100 = tpu.matmul %97, %8, %cst_34 {dimension_numbers = #tpu.dot_dimension_numbers<[1], [0], [0], [1], [0, 0, 1, 1], [], []>} : vector<2x128xf32>, vector<128x128xf32>, vector<2x128xf32> -> vector<2x128xf32>
    %101 = arith.addf %99, %100 : vector<2x128xf32>
    %102 = math.tanh %101 : vector<2x128xf32>
    %103 = arith.negf %101 : vector<2x128xf32>
    %104 = math.exp %103 : vector<2x128xf32>
    %cst_35 = arith.constant 1.000000e+00 : f32
    %105 = vector.broadcast %cst_35 : f32 to vector<2x128xf32>
    %106 = arith.addf %105, %104 : vector<2x128xf32>
    %107 = arith.divf %105, %106 : vector<2x128xf32>
    %108 = arith.select %14, %102, %107 : vector<2x128xi1>, vector<2x128xf32>
    %c64_i32_36 = arith.constant 64 : i32
    %109 = tpu.dynamic_rotate %108 by %c64_i32_36 dim 1 : vector<2x128xf32>, i32 -> vector<2x128xf32>
    %110 = arith.mulf %108, %109 : vector<2x128xf32>
    %111 = arith.mulf %108, %94 : vector<2x128xf32>
    %c32_i32_37 = arith.constant 32 : i32
    %112 = tpu.dynamic_rotate %110 by %c32_i32_37 dim 1 : vector<2x128xf32>, i32 -> vector<2x128xf32>
    %113 = arith.addf %111, %112 : vector<2x128xf32>
    %c64_i32_38 = arith.constant 64 : i32
    %114 = tpu.dynamic_rotate %113 by %c64_i32_38 dim 1 : vector<2x128xf32>, i32 -> vector<2x128xf32>
    %115 = math.tanh %114 : vector<2x128xf32>
    %116 = arith.mulf %108, %115 : vector<2x128xf32>
    %117 = vector.extract_strided_slice %7 {offsets = [0, 5, 0], sizes = [2, 1, 128], strides = [1, 1, 1]} : vector<2x8x128xf32> to vector<2x1x128xf32>
    %118 = vector.shape_cast %117 : vector<2x1x128xf32> to vector<2x128xf32>
    %cst_39 = arith.constant dense<0.000000e+00> : vector<2x128xf32>
    %119 = tpu.matmul %116, %8, %cst_39 {dimension_numbers = #tpu.dot_dimension_numbers<[1], [0], [0], [1], [0, 0, 1, 1], [], []>} : vector<2x128xf32>, vector<128x128xf32>, vector<2x128xf32> -> vector<2x128xf32>
    %120 = arith.addf %118, %119 : vector<2x128xf32>
    %121 = math.tanh %120 : vector<2x128xf32>
    %122 = arith.negf %120 : vector<2x128xf32>
    %123 = math.exp %122 : vector<2x128xf32>
    %cst_40 = arith.constant 1.000000e+00 : f32
    %124 = vector.broadcast %cst_40 : f32 to vector<2x128xf32>
    %125 = arith.addf %124, %123 : vector<2x128xf32>
    %126 = arith.divf %124, %125 : vector<2x128xf32>
    %127 = arith.select %14, %121, %126 : vector<2x128xi1>, vector<2x128xf32>
    %c64_i32_41 = arith.constant 64 : i32
    %128 = tpu.dynamic_rotate %127 by %c64_i32_41 dim 1 : vector<2x128xf32>, i32 -> vector<2x128xf32>
    %129 = arith.mulf %127, %128 : vector<2x128xf32>
    %130 = arith.mulf %127, %113 : vector<2x128xf32>
    %c32_i32_42 = arith.constant 32 : i32
    %131 = tpu.dynamic_rotate %129 by %c32_i32_42 dim 1 : vector<2x128xf32>, i32 -> vector<2x128xf32>
    %132 = arith.addf %130, %131 : vector<2x128xf32>
    %c64_i32_43 = arith.constant 64 : i32
    %133 = tpu.dynamic_rotate %132 by %c64_i32_43 dim 1 : vector<2x128xf32>, i32 -> vector<2x128xf32>
    %134 = math.tanh %133 : vector<2x128xf32>
    %135 = arith.mulf %127, %134 : vector<2x128xf32>
    %136 = vector.extract_strided_slice %7 {offsets = [0, 6, 0], sizes = [2, 1, 128], strides = [1, 1, 1]} : vector<2x8x128xf32> to vector<2x1x128xf32>
    %137 = vector.shape_cast %136 : vector<2x1x128xf32> to vector<2x128xf32>
    %cst_44 = arith.constant dense<0.000000e+00> : vector<2x128xf32>
    %138 = tpu.matmul %135, %8, %cst_44 {dimension_numbers = #tpu.dot_dimension_numbers<[1], [0], [0], [1], [0, 0, 1, 1], [], []>} : vector<2x128xf32>, vector<128x128xf32>, vector<2x128xf32> -> vector<2x128xf32>
    %139 = arith.addf %137, %138 : vector<2x128xf32>
    %140 = math.tanh %139 : vector<2x128xf32>
    %141 = arith.negf %139 : vector<2x128xf32>
    %142 = math.exp %141 : vector<2x128xf32>
    %cst_45 = arith.constant 1.000000e+00 : f32
    %143 = vector.broadcast %cst_45 : f32 to vector<2x128xf32>
    %144 = arith.addf %143, %142 : vector<2x128xf32>
    %145 = arith.divf %143, %144 : vector<2x128xf32>
    %146 = arith.select %14, %140, %145 : vector<2x128xi1>, vector<2x128xf32>
    %c64_i32_46 = arith.constant 64 : i32
    %147 = tpu.dynamic_rotate %146 by %c64_i32_46 dim 1 : vector<2x128xf32>, i32 -> vector<2x128xf32>
    %148 = arith.mulf %146, %147 : vector<2x128xf32>
    %149 = arith.mulf %146, %132 : vector<2x128xf32>
    %c32_i32_47 = arith.constant 32 : i32
    %150 = tpu.dynamic_rotate %148 by %c32_i32_47 dim 1 : vector<2x128xf32>, i32 -> vector<2x128xf32>
    %151 = arith.addf %149, %150 : vector<2x128xf32>
    %c64_i32_48 = arith.constant 64 : i32
    %152 = tpu.dynamic_rotate %151 by %c64_i32_48 dim 1 : vector<2x128xf32>, i32 -> vector<2x128xf32>
    %153 = math.tanh %152 : vector<2x128xf32>
    %154 = arith.mulf %146, %153 : vector<2x128xf32>
    %155 = vector.extract_strided_slice %7 {offsets = [0, 7, 0], sizes = [2, 1, 128], strides = [1, 1, 1]} : vector<2x8x128xf32> to vector<2x1x128xf32>
    %156 = vector.shape_cast %155 : vector<2x1x128xf32> to vector<2x128xf32>
    %cst_49 = arith.constant dense<0.000000e+00> : vector<2x128xf32>
    %157 = tpu.matmul %154, %8, %cst_49 {dimension_numbers = #tpu.dot_dimension_numbers<[1], [0], [0], [1], [0, 0, 1, 1], [], []>} : vector<2x128xf32>, vector<128x128xf32>, vector<2x128xf32> -> vector<2x128xf32>
    %158 = arith.addf %156, %157 : vector<2x128xf32>
    %159 = math.tanh %158 : vector<2x128xf32>
    %160 = arith.negf %158 : vector<2x128xf32>
    %161 = math.exp %160 : vector<2x128xf32>
    %cst_50 = arith.constant 1.000000e+00 : f32
    %162 = vector.broadcast %cst_50 : f32 to vector<2x128xf32>
    %163 = arith.addf %162, %161 : vector<2x128xf32>
    %164 = arith.divf %162, %163 : vector<2x128xf32>
    %165 = arith.select %14, %159, %164 : vector<2x128xi1>, vector<2x128xf32>
    %c64_i32_51 = arith.constant 64 : i32
    %166 = tpu.dynamic_rotate %165 by %c64_i32_51 dim 1 : vector<2x128xf32>, i32 -> vector<2x128xf32>
    %167 = arith.mulf %165, %166 : vector<2x128xf32>
    %168 = arith.mulf %165, %151 : vector<2x128xf32>
    %c32_i32_52 = arith.constant 32 : i32
    %169 = tpu.dynamic_rotate %167 by %c32_i32_52 dim 1 : vector<2x128xf32>, i32 -> vector<2x128xf32>
    %170 = arith.addf %168, %169 : vector<2x128xf32>
    %c64_i32_53 = arith.constant 64 : i32
    %171 = tpu.dynamic_rotate %170 by %c64_i32_53 dim 1 : vector<2x128xf32>, i32 -> vector<2x128xf32>
    %172 = math.tanh %171 : vector<2x128xf32>
    %173 = arith.mulf %165, %172 : vector<2x128xf32>
    %174 = vector.extract_strided_slice %173 {offsets = [0, 96], sizes = [2, 32], strides = [1, 1]} : vector<2x128xf32> to vector<2x32xf32>
    %175 = vector.extract_strided_slice %170 {offsets = [0, 32], sizes = [2, 32], strides = [1, 1]} : vector<2x128xf32> to vector<2x32xf32>
    %176 = vector.shape_cast %174 : vector<2x32xf32> to vector<1x2x32xf32>
    %c0_54 = arith.constant 0 : index
    %c0_55 = arith.constant 0 : index
    %c0_56 = arith.constant 0 : index
    %177 = vector.load %arg9[%c0_54, %c0_55, %c0_56] : memref<1x2x32xf32, #tpu.memory_space<vmem>>, vector<1x2x32xf32>
    tpu.vector_store %arg9[%c0_54, %c0_55, %c0_56], %176 {strides = array<i32>} : memref<1x2x32xf32, #tpu.memory_space<vmem>>, vector<1x2x32xf32>,
    %178 = vector.shape_cast %175 : vector<2x32xf32> to vector<1x2x32xf32>
    %c0_57 = arith.constant 0 : index
    %c0_58 = arith.constant 0 : index
    %c0_59 = arith.constant 0 : index
    %179 = vector.load %arg10[%c0_57, %c0_58, %c0_59] : memref<1x2x32xf32, #tpu.memory_space<vmem>>, vector<1x2x32xf32>
    tpu.vector_store %arg10[%c0_57, %c0_58, %c0_59], %178 {strides = array<i32>} : memref<1x2x32xf32, #tpu.memory_space<vmem>>, vector<1x2x32xf32>,
    %c0_60 = arith.constant 0 : index
    %c0_61 = arith.constant 0 : index
    %180 = vector.load %arg4[%c0_60, %c0_61] : memref<1x32xf32, #tpu.memory_space<vmem>>, vector<1x32xf32>
    %181 = vector.broadcast %180 : vector<1x32xf32> to vector<2x32xf32>
    %182 = arith.mulf %174, %181 : vector<2x32xf32>
    %cst_62 = arith.constant dense<0.000000e+00> : vector<2xf32>
    %183 = vector.multi_reduction <add>, %182, %cst_62 [1] : vector<2x32xf32> to vector<2xf32>
    %184 = vector.shape_cast %183 : vector<2xf32> to vector<2x1xf32>
    %c0_63 = arith.constant 0 : index
    %c0_64 = arith.constant 0 : index
    %185 = vector.load %arg5[%c0_63, %c0_64] : memref<1x1xf32, #tpu.memory_space<vmem>>, vector<1x1xf32>
    %186 = vector.broadcast %185 : vector<1x1xf32> to vector<2x1xf32>
    %187 = arith.addf %184, %186 : vector<2x1xf32>
    %c0_65 = arith.constant 0 : index
    %c0_66 = arith.constant 0 : index
    %188 = vector.load %arg8[%c0_65, %c0_66] : memref<2x1xf32, #tpu.memory_space<vmem>>, vector<2x1xf32>
    tpu.vector_store %arg8[%c0_65, %c0_66], %187 {strides = array<i32>} : memref<2x1xf32, #tpu.memory_space<vmem>>, vector<2x1xf32>,
    return
  }
}

</mosaic_0001>

<llo_original>
// kernel: lstm_net_forward.1
$region0: #{lstm_net_forward.1}
  #allocation0 [shape = 'u32[]', space=smem, size = 0x4, offset = 0x4, fixed_abs, tag = 'smem constant byte address 0x4 - core index']
  #allocation1 [shape = 'u32[144,128]{1,0:T(1,128)}', space=vmem, size = 0x12000, scoped, tag = 'internal scratch']
  #allocation2 [shape = 'f32[1,1]{1,0:T(1,128)S(1)}', space=vmem, size = 0x200, scoped, tag = 'scoped memory for lstm_net_forward.1']
  %s0 = inlined_call_operand.vmem [shape: f32[2,8,4], index: 0, kind: input, shape index: {}]
  %s1 = inlined_call_operand.vmem [shape: f32[4,128], index: 1, kind: input, shape index: {}]
  %s2 = inlined_call_operand.hbm [shape: f32[128,128], index: 2, kind: input, shape index: {}]
  %s3 = inlined_call_operand.vmem [shape: f32[1,128], index: 3, kind: input, shape index: {}]
  %s4 = inlined_call_operand.vmem [shape: f32[1,32], index: 4, kind: input, shape index: {}]
  %s5 = inlined_call_operand.<no memory space> [shape: f32[1,1], index: 5, kind: input, shape index: {}]
  %s6 = inlined_call_operand.vmem [shape: f32[1,2,32], index: 6, kind: input, shape index: {}]
  %s7 = inlined_call_operand.vmem [shape: f32[1,2,32], index: 7, kind: input, shape index: {}]
  %s8 = inlined_call_operand.vmem [shape: f32[2,1], index: 8, kind: output, shape index: {0}]
  %s9 = inlined_call_operand.hbm [shape: f32[1,2,32], index: 9, kind: output, shape index: {1}]
  %s10 = inlined_call_operand.hbm [shape: f32[1,2,32], index: 10, kind: output, shape index: {2}]
  %11 = xla_tuple %s8, %s9, %s10
  %s12 = sld [smem:[#allocation0]]
  $region62: #{lstm_net_forward.1} parent=0
    _
  %s14 = ssub.s32 1, %s12
  %s15 = scalar_select 0, %s14, %s12
  %v16 = vstv %s5
  %17 = vst [vmem:[#allocation2] sm:$0x1] %v16
  $region1: #{lstm_net_forward.1} parent=0
    #allocation3 [shape = 'u8[65536]{0}', space=vmem, size = 0x10000, scoped, tag = 'input window, operand 2, single buffered']
    #allocation4 [shape = 's32[1]{0}', space=sflag, size = 0x4, scoped, tag = 'scoped memory for lstm_net_forward.1']
    #allocation5 [shape = 's32[1]{0}', space=sflag, size = 0x4, scoped, tag = 'scoped memory for lstm_net_forward.1']
    #allocation6 [shape = 'u8[1024]{0}', space=vmem, size = 0x400, scoped, tag = 'output window, operand 1, single buffered']
    #allocation7 [shape = 'u8[1024]{0}', space=vmem, size = 0x400, scoped, tag = 'output window, operand 2, single buffered']
    #allocation8 [shape = 's32[1]{0}', space=sflag, size = 0x4, scoped, tag = 'scoped memory for lstm_net_forward.1']
    %18 = vsyncpa [#allocation4], 0
    %19 = vsyncpa [#allocation5], 0
    %20 = vsyncpa [#allocation8], 0
    // Predicated region
    $region2: #{lstm_net_forward.1} parent=1 // pred_check
      _
    $region3: #{lstm_net_forward.1} parent=1 // pred_check_branch
      %22 = sbr.rel (0) target = $region5
    $region4: #{lstm_net_forward.1} parent=1 // pred_region
      _
    $region5: #{lstm_net_forward.1} parent=1 // pred_fallthru
      _
    // Predicated region
    $region6: #{lstm_net_forward.1} parent=1 // pred_check
      _
    $region7: #{lstm_net_forward.1} parent=1 // pred_check_branch
      %24 = sbr.rel (0) target = $region9
    $region8: #{lstm_net_forward.1} parent=1 // pred_region
      _
    $region9: #{lstm_net_forward.1} parent=1 // pred_fallthru
      _
    // Predicated region
    $region10: #{lstm_net_forward.1} parent=1 // pred_check
      _
    $region11: #{lstm_net_forward.1} parent=1 // pred_check_branch
      %26 = sbr.rel (0) target = $region13
    $region12: #{lstm_net_forward.1} parent=1 // pred_region
      %s28 = ssub.s32 2048, 2048
      %29 = vsyncadd [#allocation4], %s28
      %s30 = sshll.u32 [#allocation3], 4
      %s31 = int_to_ptr.vmem [resolvable:$true] %s30
      %36 = dma.hbm_to_vmem [thread:$0]  %s2, 2048, %s31, [#allocation4], 128, 128, 8
    $region13: #{lstm_net_forward.1} parent=1 // pred_fallthru
      _
    // Predicated region
    $region14: #{lstm_net_forward.1} parent=1 // pred_check
      _
    $region15: #{lstm_net_forward.1} parent=1 // pred_check_branch
      %38 = sbr.rel (0) target = $region17
    $region16: #{lstm_net_forward.1} parent=1 // pred_region
      _
    $region17: #{lstm_net_forward.1} parent=1 // pred_fallthru
      _
    // Predicated region
    $region18: #{lstm_net_forward.1} parent=1 // pred_check
      _
    $region19: #{lstm_net_forward.1} parent=1 // pred_check_branch
      %40 = sbr.rel (0) target = $region21
    $region20: #{lstm_net_forward.1} parent=1 // pred_region
      _
    $region21: #{lstm_net_forward.1} parent=1 // pred_fallthru
      _
    // Predicated region
    $region22: #{lstm_net_forward.1} parent=1 // pred_check
      _
    $region23: #{lstm_net_forward.1} parent=1 // pred_check_branch
      %42 = sbr.rel (0) target = $region25
    $region24: #{lstm_net_forward.1} parent=1 // pred_region
      _
    $region25: #{lstm_net_forward.1} parent=1 // pred_fallthru
      _
    // Predicated region
    $region26: #{lstm_net_forward.1} parent=1 // pred_check
      _
    $region27: #{lstm_net_forward.1} parent=1 // pred_check_branch
      %44 = sbr.rel (0) target = $region29
    $region28: #{lstm_net_forward.1} parent=1 // pred_region
      _
    $region29: #{lstm_net_forward.1} parent=1 // pred_fallthru
      _
    // Predicated region
    $region30: #{lstm_net_forward.1} parent=1 // pred_check
      _
    $region31: #{lstm_net_forward.1} parent=1 // pred_check_branch
      %46 = sbr.rel (0) target = $region33
    $region32: #{lstm_net_forward.1} parent=1 // pred_region
      _
    $region33: #{lstm_net_forward.1} parent=1 // pred_fallthru
      _
    // Predicated region
    $region34: #{lstm_net_forward.1} parent=1 // pred_check
      _
    $region35: #{lstm_net_forward.1} parent=1 // pred_check_branch
      %48 = sbr.rel (0) target = $region37
    $region36: #{lstm_net_forward.1} parent=1 // pred_region
      %49 = dma.done [#allocation4], 2048
    $region37: #{lstm_net_forward.1} parent=1 // pred_fallthru
      _
    %v50 = vld [vmem:[%s0] sm:$0xff]
    %v51 = vld [vmem:[%s0 + $0x8] sm:$0xff]
    %v52 = vld [vmem:[%s1] sm:$0xf]
    %v53 = vld [vmem:[%s3] sm:$0x1]
    %v55 = vlaneseq
    %v56 = vshrl.u32 %v55, 7
    %v57 = vsub.s32 0, %v56
    %v58 = vrot.slane %v53, %v57
    %vm60 = vcmask 31744
    %v62 = vsel %vm60, %v50, 0
    %v65 = vsel %vm60, %v51, 0
    %vm67 = vcmask 1043456
    %v69 = vsel %vm67, %v52, 0
    %71 = vmatprep.subr.mxu0 0.0
    %72 = vmatpush1.msra.mxu0 0.0
    %73 = vmatprep.subr.mxu0 0.0
    %74 = vmatpush1.msra.mxu0 0.0
    %75 = vmatprep.subr.mxu0 0.0
    %76 = vmatpush1.msra.mxu0 0.0
    %77 = vmatprep.subr.mxu0 0.0
    %78 = vmatpush1.msra.mxu0 0.0
    %79 = vmatprep.subr.mxu0 0.0
    %80 = vmatpush1.msra.mxu0 0.0
    %81 = vmatprep.subr.mxu0 0.0
    %82 = vmatpush1.msra.mxu0 0.0
    %83 = vmatprep.subr.mxu0 0.0
    %84 = vmatpush1.msra.mxu0 0.0
    %85 = vmatprep.subr.mxu0 0.0
    %86 = vmatpush1.msra.mxu0 0.0
    %87 = vmatprep.subr.mxu0 0.0
    %88 = vmatpush1.msra.mxu0 0.0
    %89 = vmatprep.subr.mxu0 0.0
    %90 = vmatpush1.msra.mxu0 0.0
    %91 = vmatprep.subr.mxu0 0.0
    %92 = vmatpush1.msra.mxu0 0.0
    %93 = vmatprep.subr.mxu0 0.0
    %94 = vmatpush1.msra.mxu0 0.0
    %95 = vmatprep.subr.mxu0 0.0
    %96 = vmatpush1.msra.mxu0 0.0
    %97 = vmatprep.subr.mxu0 0.0
    %98 = vmatpush1.msra.mxu0 0.0
    %99 = vmatprep.subr.mxu0 0.0
    %100 = vmatpush1.msra.mxu0 0.0
    %101 = vmatprep.subr.mxu0 0.0
    %102 = vmatpush1.msra.mxu0 %v69
    %103 = vmatprep.subr.mxu0 0.0
    %104 = vmatpush2.msra.mxu0 0.0
    %105 = vmatprep.subr.mxu0 0.0
    %106 = vmatpush2.msra.mxu0 0.0
    %107 = vmatprep.subr.mxu0 0.0
    %108 = vmatpush2.msra.mxu0 0.0
    %109 = vmatprep.subr.mxu0 0.0
    %110 = vmatpush2.msra.mxu0 0.0
    %111 = vmatprep.subr.mxu0 0.0
    %112 = vmatpush2.msra.mxu0 0.0
    %113 = vmatprep.subr.mxu0 0.0
    %114 = vmatpush2.msra.mxu0 0.0
    %115 = vmatprep.subr.mxu0 0.0
    %116 = vmatpush2.msra.mxu0 0.0
    %117 = vmatprep.subr.mxu0 0.0
    %118 = vmatpush2.msra.mxu0 0.0
    %119 = vmatprep.subr.mxu0 0.0
    %120 = vmatpush2.msra.mxu0 0.0
    %121 = vmatprep.subr.mxu0 0.0
    %122 = vmatpush2.msra.mxu0 0.0
    %123 = vmatprep.subr.mxu0 0.0
    %124 = vmatpush2.msra.mxu0 0.0
    %125 = vmatprep.subr.mxu0 0.0
    %126 = vmatpush2.msra.mxu0 0.0
    %127 = vmatprep.subr.mxu0 0.0
    %128 = vmatpush2.msra.mxu0 0.0
    %129 = vmatprep.subr.mxu0 0.0
    %130 = vmatpush2.msra.mxu0 0.0
    %131 = vmatprep.subr.mxu0 0.0
    %132 = vmatpush2.msra.mxu0 0.0
    %133 = vmatprep.subr.mxu0 0.0
    %134 = vmatpush2.msra.mxu0 0.0
    %135 = vmatprep.mubr.f32.mxu0 0.0
    %136 = vmatmul.mubr.f32.gmra.mxu0 %v62
    %v137 = vpop.f32.mrf.mxu0
    %v138 = vadd.f32 %v58, %v137
    %v139 = vpop.f32.mrf.mxu0
    %140 = vmatprep.mubr.f32.mxu0 0.0
    %141 = vmatmul.mubr.f32.gmra.mxu0 %v65
    %v142 = vpop.f32.mrf.mxu0
    %v143 = vadd.f32 %v58, %v142
    %v144 = vpop.f32.mrf.mxu0
    %145 = vdwg.mxu0
    %v146 = vld [vmem:[#allocation3] sm:$0xff]
    %v147 = vld [vmem:[#allocation3 + $0x8] sm:$0xff]
    %v148 = vld [vmem:[#allocation3 + $0x10] sm:$0xff]
    %v149 = vld [vmem:[#allocation3 + $0x18] sm:$0xff]
    %v150 = vld [vmem:[#allocation3 + $0x20] sm:$0xff]
    %v151 = vld [vmem:[#allocation3 + $0x28] sm:$0xff]
    %v152 = vld [vmem:[#allocation3 + $0x30] sm:$0xff]
    %v153 = vld [vmem:[#allocation3 + $0x38] sm:$0xff]
    %v154 = vld [vmem:[#allocation3 + $0x40] sm:$0xff]
    %v155 = vld [vmem:[#allocation3 + $0x48] sm:$0xff]
    %v156 = vld [vmem:[#allocation3 + $0x50] sm:$0xff]
    %v157 = vld [vmem:[#allocation3 + $0x58] sm:$0xff]
    %v158 = vld [vmem:[#allocation3 + $0x60] sm:$0xff]
    %v159 = vld [vmem:[#allocation3 + $0x68] sm:$0xff]
    %v160 = vld [vmem:[#allocation3 + $0x70] sm:$0xff]
    %v161 = vld [vmem:[#allocation3 + $0x78] sm:$0xff]
    %v162 = vlaneseq
    %v163 = vand.u32 %v162, 127
    %vm164 = vcmp.ge.s32.totalorder %v163, 64
    %vm165 = vcmp.lt.s32.totalorder %v163, 96
    %vm166 = vmand %vm164, %vm165
    %v167 = vld [vmem:[%s7] sm:$0x3]
    %169 = vrot.lane.b32.xlu0 %v167, 32
    %v170 = vpop.permute.xlu0 %169
    %vm172 = vcmask 261120
    %v173 = vsel %vm172, 0.0, %v170
    %vm174 = vcmask 523264
    %v175 = vsel %vm174, %v173, 0.0
    %vm176 = vcmask 785408
    %v177 = vsel %vm176, %v175, 0.0
    %v178 = vld [vmem:[%s6] sm:$0x3]
    %180 = vrot.lane.b32.xlu0 %v178, 96
    %v181 = vpop.permute.xlu0 %180
    %v183 = vsel %vm176, 0.0, %v181
    %184 = vmatprep.subr.mxu0 0.0
    %185 = vmatpush1.msra.mxu0 %v161
    %186 = vmatprep.subr.mxu0 0.0
    %187 = vmatpush1.msra.mxu0 %v160
    %188 = vmatprep.subr.mxu0 0.0
    %189 = vmatpush1.msra.mxu0 %v159
    %190 = vmatprep.subr.mxu0 0.0
    %191 = vmatpush1.msra.mxu0 %v158
    %192 = vmatprep.subr.mxu0 0.0
    %193 = vmatpush1.msra.mxu0 %v157
    %194 = vmatprep.subr.mxu0 0.0
    %195 = vmatpush1.msra.mxu0 %v156
    %196 = vmatprep.subr.mxu0 0.0
    %197 = vmatpush1.msra.mxu0 %v155
    %198 = vmatprep.subr.mxu0 0.0
    %199 = vmatpush1.msra.mxu0 %v154
    %200 = vmatprep.subr.mxu0 0.0
    %201 = vmatpush1.msra.mxu0 %v153
    %202 = vmatprep.subr.mxu0 0.0
    %203 = vmatpush1.msra.mxu0 %v152
    %204 = vmatprep.subr.mxu0 0.0
    %205 = vmatpush1.msra.mxu0 %v151
    %206 = vmatprep.subr.mxu0 0.0
    %207 = vmatpush1.msra.mxu0 %v150
    %208 = vmatprep.subr.mxu0 0.0
    %209 = vmatpush1.msra.mxu0 %v149
    %210 = vmatprep.subr.mxu0 0.0
    %211 = vmatpush1.msra.mxu0 %v148
    %212 = vmatprep.subr.mxu0 0.0
    %213 = vmatpush1.msra.mxu0 %v147
    %214 = vmatprep.subr.mxu0 0.0
    %215 = vmatpush1.msra.mxu0 %v146
    %216 = vmatprep.subr.mxu0 0.0
    %217 = vmatpush2.msra.mxu0 0.0
    %218 = vmatprep.subr.mxu0 0.0
    %219 = vmatpush2.msra.mxu0 0.0
    %220 = vmatprep.subr.mxu0 0.0
    %221 = vmatpush2.msra.mxu0 0.0
    %222 = vmatprep.subr.mxu0 0.0
    %223 = vmatpush2.msra.mxu0 0.0
    %224 = vmatprep.subr.mxu0 0.0
    %225 = vmatpush2.msra.mxu0 0.0
    %226 = vmatprep.subr.mxu0 0.0
    %227 = vmatpush2.msra.mxu0 0.0
    %228 = vmatprep.subr.mxu0 0.0
    %229 = vmatpush2.msra.mxu0 0.0
    %230 = vmatprep.subr.mxu0 0.0
    %231 = vmatpush2.msra.mxu0 0.0
    %232 = vmatprep.subr.mxu0 0.0
    %233 = vmatpush2.msra.mxu0 0.0
    %234 = vmatprep.subr.mxu0 0.0
    %235 = vmatpush2.msra.mxu0 0.0
    %236 = vmatprep.subr.mxu0 0.0
    %237 = vmatpush2.msra.mxu0 0.0
    %238 = vmatprep.subr.mxu0 0.0
    %239 = vmatpush2.msra.mxu0 0.0
    %240 = vmatprep.subr.mxu0 0.0
    %241 = vmatpush2.msra.mxu0 0.0
    %242 = vmatprep.subr.mxu0 0.0
    %243 = vmatpush2.msra.mxu0 0.0
    %244 = vmatprep.subr.mxu0 0.0
    %245 = vmatpush2.msra.mxu0 0.0
    %246 = vmatprep.subr.mxu0 0.0
    %247 = vmatpush2.msra.mxu0 0.0
    %248 = vmatprep.mubr.f32.mxu0 0.0
    %249 = vmatmul.mubr.f32.gmra.mxu0 %v183
    %v250 = vpop.f32.mrf.mxu0
    %v251 = vadd.f32 0.0, %v250
    %v252 = vpop.f32.mrf.mxu0
    %253 = vdwg.mxu0
    %v255 = vrot.slane %v251, 1
    %v258 = vadd.f32 %v138, %v251
    %v259 = vadd.f32 %v143, %v255
    %v260 = vtanh.pop %v258
    %v261 = vtanh.pop %v259
    %v262 = vxor.u32 %v258, 2147483648
    %v263 = vxor.u32 %v259, 2147483648
    %v264 = vmul.f32 %v262, 1.442695
    %v265 = vpow.pop %v264
    %v266 = vmul.f32 %v263, 1.442695
    %v267 = vpow.pop %v266
    %v268 = vadd.f32 %v265, 1.0
    %v269 = vadd.f32 %v267, 1.0
    %v270 = vrcp.pop %v268
    %v271 = vmul.f32 1.0, %v270
    %v272 = vrcp.pop %v269
    %v273 = vmul.f32 1.0, %v272
    %v276 = vrot.slane %v261, 7
    %vm277 = vcmask 1041409
    %v278 = vsel %vm277, %v276, %v260
    %v282 = vrot.slane %v273, 7
    %v283 = vsel %vm277, %v282, %v271
    %v285 = vsel %vm166, %v278, %v283
    %286 = vrot.lane.b32.xlu0 %v285, 64
    %v287 = vpop.permute.xlu0 %286
    %v288 = vmul.f32 %v285, %v287
    %v289 = vmul.f32 %v285, %v177
    %290 = vrot.lane.b32.xlu0 %v288, 32
    %v291 = vpop.permute.xlu0 %290
    %v292 = vadd.f32 %v289, %v291
    %293 = vrot.lane.b32.xlu0 %v292, 64
    %v294 = vpop.permute.xlu0 %293
    %v295 = vtanh.pop %v294
    %v296 = vmul.f32 %v285, %v295
    %297 = vmatprep.subr.mxu0 0.0
    %298 = vmatpush1.msra.mxu0 %v161
    %299 = vmatprep.subr.mxu0 0.0
    %300 = vmatpush1.msra.mxu0 %v160
    %301 = vmatprep.subr.mxu0 0.0
    %302 = vmatpush1.msra.mxu0 %v159
    %303 = vmatprep.subr.mxu0 0.0
    %304 = vmatpush1.msra.mxu0 %v158
    %305 = vmatprep.subr.mxu0 0.0
    %306 = vmatpush1.msra.mxu0 %v157
    %307 = vmatprep.subr.mxu0 0.0
    %308 = vmatpush1.msra.mxu0 %v156
    %309 = vmatprep.subr.mxu0 0.0
    %310 = vmatpush1.msra.mxu0 %v155
    %311 = vmatprep.subr.mxu0 0.0
    %312 = vmatpush1.msra.mxu0 %v154
    %313 = vmatprep.subr.mxu0 0.0
    %314 = vmatpush1.msra.mxu0 %v153
    %315 = vmatprep.subr.mxu0 0.0
    %316 = vmatpush1.msra.mxu0 %v152
    %317 = vmatprep.subr.mxu0 0.0
    %318 = vmatpush1.msra.mxu0 %v151
    %319 = vmatprep.subr.mxu0 0.0
    %320 = vmatpush1.msra.mxu0 %v150
    %321 = vmatprep.subr.mxu0 0.0
    %322 = vmatpush1.msra.mxu0 %v149
    %323 = vmatprep.subr.mxu0 0.0
    %324 = vmatpush1.msra.mxu0 %v148
    %325 = vmatprep.subr.mxu0 0.0
    %326 = vmatpush1.msra.mxu0 %v147
    %327 = vmatprep.subr.mxu0 0.0
    %328 = vmatpush1.msra.mxu0 %v146
    %329 = vmatprep.subr.mxu0 0.0
    %330 = vmatpush2.msra.mxu0 0.0
    %331 = vmatprep.subr.mxu0 0.0
    %332 = vmatpush2.msra.mxu0 0.0
    %333 = vmatprep.subr.mxu0 0.0
    %334 = vmatpush2.msra.mxu0 0.0
    %335 = vmatprep.subr.mxu0 0.0
    %336 = vmatpush2.msra.mxu0 0.0
    %337 = vmatprep.subr.mxu0 0.0
    %338 = vmatpush2.msra.mxu0 0.0
    %339 = vmatprep.subr.mxu0 0.0
    %340 = vmatpush2.msra.mxu0 0.0
    %341 = vmatprep.subr.mxu0 0.0
    %342 = vmatpush2.msra.mxu0 0.0
    %343 = vmatprep.subr.mxu0 0.0
    %344 = vmatpush2.msra.mxu0 0.0
    %345 = vmatprep.subr.mxu0 0.0
    %346 = vmatpush2.msra.mxu0 0.0
    %347 = vmatprep.subr.mxu0 0.0
    %348 = vmatpush2.msra.mxu0 0.0
    %349 = vmatprep.subr.mxu0 0.0
    %350 = vmatpush2.msra.mxu0 0.0
    %351 = vmatprep.subr.mxu0 0.0
    %352 = vmatpush2.msra.mxu0 0.0
    %353 = vmatprep.subr.mxu0 0.0
    %354 = vmatpush2.msra.mxu0 0.0
    %355 = vmatprep.subr.mxu0 0.0
    %356 = vmatpush2.msra.mxu0 0.0
    %357 = vmatprep.subr.mxu0 0.0
    %358 = vmatpush2.msra.mxu0 0.0
    %359 = vmatprep.subr.mxu0 0.0
    %360 = vmatpush2.msra.mxu0 0.0
    %361 = vmatprep.mubr.f32.mxu0 0.0
    %362 = vmatmul.mubr.f32.gmra.mxu0 %v296
    %v363 = vpop.f32.mrf.mxu0
    %v364 = vadd.f32 0.0, %v363
    %v365 = vpop.f32.mrf.mxu0
    %366 = vdwg.mxu0
    %v368 = vrot.slane %v364, 7
    %v371 = vadd.f32 %v138, %v368
    %v372 = vadd.f32 %v143, %v364
    %v373 = vtanh.pop %v371
    %v374 = vtanh.pop %v372
    %v375 = vxor.u32 %v371, 2147483648
    %v376 = vxor.u32 %v372, 2147483648
    %v377 = vmul.f32 %v375, 1.442695
    %v378 = vpow.pop %v377
    %v379 = vmul.f32 %v376, 1.442695
    %v380 = vpow.pop %v379
    %v381 = vadd.f32 %v378, 1.0
    %v382 = vadd.f32 %v380, 1.0
    %v383 = vrcp.pop %v381
    %v384 = vmul.f32 1.0, %v383
    %v385 = vrcp.pop %v382
    %v386 = vmul.f32 1.0, %v385
    %v389 = vrot.slane %v373, 1
    %v390 = vsel %vm277, %v374, %v389
    %v394 = vrot.slane %v384, 1
    %v395 = vsel %vm277, %v386, %v394
    %v397 = vsel %vm166, %v390, %v395
    %398 = vrot.lane.b32.xlu0 %v397, 64
    %v399 = vpop.permute.xlu0 %398
    %v400 = vmul.f32 %v397, %v399
    %v401 = vmul.f32 %v397, %v292
    %402 = vrot.lane.b32.xlu0 %v400, 32
    %v403 = vpop.permute.xlu0 %402
    %v404 = vadd.f32 %v401, %v403
    %405 = vrot.lane.b32.xlu0 %v404, 64
    %v406 = vpop.permute.xlu0 %405
    %v407 = vtanh.pop %v406
    %v408 = vmul.f32 %v397, %v407
    %409 = vmatprep.subr.mxu0 0.0
    %410 = vmatpush1.msra.mxu0 %v161
    %411 = vmatprep.subr.mxu0 0.0
    %412 = vmatpush1.msra.mxu0 %v160
    %413 = vmatprep.subr.mxu0 0.0
    %414 = vmatpush1.msra.mxu0 %v159
    %415 = vmatprep.subr.mxu0 0.0
    %416 = vmatpush1.msra.mxu0 %v158
    %417 = vmatprep.subr.mxu0 0.0
    %418 = vmatpush1.msra.mxu0 %v157
    %419 = vmatprep.subr.mxu0 0.0
    %420 = vmatpush1.msra.mxu0 %v156
    %421 = vmatprep.subr.mxu0 0.0
    %422 = vmatpush1.msra.mxu0 %v155
    %423 = vmatprep.subr.mxu0 0.0
    %424 = vmatpush1.msra.mxu0 %v154
    %425 = vmatprep.subr.mxu0 0.0
    %426 = vmatpush1.msra.mxu0 %v153
    %427 = vmatprep.subr.mxu0 0.0
    %428 = vmatpush1.msra.mxu0 %v152
    %429 = vmatprep.subr.mxu0 0.0
    %430 = vmatpush1.msra.mxu0 %v151
    %431 = vmatprep.subr.mxu0 0.0
    %432 = vmatpush1.msra.mxu0 %v150
    %433 = vmatprep.subr.mxu0 0.0
    %434 = vmatpush1.msra.mxu0 %v149
    %435 = vmatprep.subr.mxu0 0.0
    %436 = vmatpush1.msra.mxu0 %v148
    %437 = vmatprep.subr.mxu0 0.0
    %438 = vmatpush1.msra.mxu0 %v147
    %439 = vmatprep.subr.mxu0 0.0
    %440 = vmatpush1.msra.mxu0 %v146
    %441 = vmatprep.subr.mxu0 0.0
    %442 = vmatpush2.msra.mxu0 0.0
    %443 = vmatprep.subr.mxu0 0.0
    %444 = vmatpush2.msra.mxu0 0.0
    %445 = vmatprep.subr.mxu0 0.0
    %446 = vmatpush2.msra.mxu0 0.0
    %447 = vmatprep.subr.mxu0 0.0
    %448 = vmatpush2.msra.mxu0 0.0
    %449 = vmatprep.subr.mxu0 0.0
    %450 = vmatpush2.msra.mxu0 0.0
    %451 = vmatprep.subr.mxu0 0.0
    %452 = vmatpush2.msra.mxu0 0.0
    %453 = vmatprep.subr.mxu0 0.0
    %454 = vmatpush2.msra.mxu0 0.0
    %455 = vmatprep.subr.mxu0 0.0
    %456 = vmatpush2.msra.mxu0 0.0
    %457 = vmatprep.subr.mxu0 0.0
    %458 = vmatpush2.msra.mxu0 0.0
    %459 = vmatprep.subr.mxu0 0.0
    %460 = vmatpush2.msra.mxu0 0.0
    %461 = vmatprep.subr.mxu0 0.0
    %462 = vmatpush2.msra.mxu0 0.0
    %463 = vmatprep.subr.mxu0 0.0
    %464 = vmatpush2.msra.mxu0 0.0
    %465 = vmatprep.subr.mxu0 0.0
    %466 = vmatpush2.msra.mxu0 0.0
    %467 = vmatprep.subr.mxu0 0.0
    %468 = vmatpush2.msra.mxu0 0.0
    %469 = vmatprep.subr.mxu0 0.0
    %470 = vmatpush2.msra.mxu0 0.0
    %471 = vmatprep.subr.mxu0 0.0
    %472 = vmatpush2.msra.mxu0 0.0
    %473 = vmatprep.mubr.f32.mxu0 0.0
    %474 = vmatmul.mubr.f32.gmra.mxu0 %v408
    %v475 = vpop.f32.mrf.mxu0
    %v476 = vadd.f32 0.0, %v475
    %v477 = vpop.f32.mrf.mxu0
    %478 = vdwg.mxu0
    %v480 = vrot.slane %v476, 6
    %v481 = vrot.slane %v476, 7
    %v484 = vadd.f32 %v138, %v480
    %v485 = vadd.f32 %v143, %v481
    %v486 = vtanh.pop %v484
    %v487 = vtanh.pop %v485
    %v488 = vxor.u32 %v484, 2147483648
    %v489 = vxor.u32 %v485, 2147483648
    %v490 = vmul.f32 %v488, 1.442695
    %v491 = vpow.pop %v490
    %v492 = vmul.f32 %v489, 1.442695
    %v493 = vpow.pop %v492
    %v494 = vadd.f32 %v491, 1.0
    %v495 = vadd.f32 %v493, 1.0
    %v496 = vrcp.pop %v494
    %v497 = vmul.f32 1.0, %v496
    %v498 = vrcp.pop %v495
    %v499 = vmul.f32 1.0, %v498
    %v502 = vrot.slane %v486, 2
    %v503 = vrot.slane %v487, 1
    %v504 = vsel %vm277, %v503, %v502
    %v508 = vrot.slane %v497, 2
    %v509 = vrot.slane %v499, 1
    %v510 = vsel %vm277, %v509, %v508
    %v512 = vsel %vm166, %v504, %v510
    %513 = vrot.lane.b32.xlu0 %v512, 64
    %v514 = vpop.permute.xlu0 %513
    %v515 = vmul.f32 %v512, %v514
    %v516 = vmul.f32 %v512, %v404
    %517 = vrot.lane.b32.xlu0 %v515, 32
    %v518 = vpop.permute.xlu0 %517
    %v519 = vadd.f32 %v516, %v518
    %520 = vrot.lane.b32.xlu0 %v519, 64
    %v521 = vpop.permute.xlu0 %520
    %v522 = vtanh.pop %v521
    %v523 = vmul.f32 %v512, %v522
    %524 = vmatprep.subr.mxu0 0.0
    %525 = vmatpush1.msra.mxu0 %v161
    %526 = vmatprep.subr.mxu0 0.0
    %527 = vmatpush1.msra.mxu0 %v160
    %528 = vmatprep.subr.mxu0 0.0
    %529 = vmatpush1.msra.mxu0 %v159
    %530 = vmatprep.subr.mxu0 0.0
    %531 = vmatpush1.msra.mxu0 %v158
    %532 = vmatprep.subr.mxu0 0.0
    %533 = vmatpush1.msra.mxu0 %v157
    %534 = vmatprep.subr.mxu0 0.0
    %535 = vmatpush1.msra.mxu0 %v156
    %536 = vmatprep.subr.mxu0 0.0
    %537 = vmatpush1.msra.mxu0 %v155
    %538 = vmatprep.subr.mxu0 0.0
    %539 = vmatpush1.msra.mxu0 %v154
    %540 = vmatprep.subr.mxu0 0.0
    %541 = vmatpush1.msra.mxu0 %v153
    %542 = vmatprep.subr.mxu0 0.0
    %543 = vmatpush1.msra.mxu0 %v152
    %544 = vmatprep.subr.mxu0 0.0
    %545 = vmatpush1.msra.mxu0 %v151
    %546 = vmatprep.subr.mxu0 0.0
    %547 = vmatpush1.msra.mxu0 %v150
    %548 = vmatprep.subr.mxu0 0.0
    %549 = vmatpush1.msra.mxu0 %v149
    %550 = vmatprep.subr.mxu0 0.0
    %551 = vmatpush1.msra.mxu0 %v148
    %552 = vmatprep.subr.mxu0 0.0
    %553 = vmatpush1.msra.mxu0 %v147
    %554 = vmatprep.subr.mxu0 0.0
    %555 = vmatpush1.msra.mxu0 %v146
    %556 = vmatprep.subr.mxu0 0.0
    %557 = vmatpush2.msra.mxu0 0.0
    %558 = vmatprep.subr.mxu0 0.0
    %559 = vmatpush2.msra.mxu0 0.0
    %560 = vmatprep.subr.mxu0 0.0
    %561 = vmatpush2.msra.mxu0 0.0
    %562 = vmatprep.subr.mxu0 0.0
    %563 = vmatpush2.msra.mxu0 0.0
    %564 = vmatprep.subr.mxu0 0.0
    %565 = vmatpush2.msra.mxu0 0.0
    %566 = vmatprep.subr.mxu0 0.0
    %567 = vmatpush2.msra.mxu0 0.0
    %568 = vmatprep.subr.mxu0 0.0
    %569 = vmatpush2.msra.mxu0 0.0
    %570 = vmatprep.subr.mxu0 0.0
    %571 = vmatpush2.msra.mxu0 0.0
    %572 = vmatprep.subr.mxu0 0.0
    %573 = vmatpush2.msra.mxu0 0.0
    %574 = vmatprep.subr.mxu0 0.0
    %575 = vmatpush2.msra.mxu0 0.0
    %576 = vmatprep.subr.mxu0 0.0
    %577 = vmatpush2.msra.mxu0 0.0
    %578 = vmatprep.subr.mxu0 0.0
    %579 = vmatpush2.msra.mxu0 0.0
    %580 = vmatprep.subr.mxu0 0.0
    %581 = vmatpush2.msra.mxu0 0.0
    %582 = vmatprep.subr.mxu0 0.0
    %583 = vmatpush2.msra.mxu0 0.0
    %584 = vmatprep.subr.mxu0 0.0
    %585 = vmatpush2.msra.mxu0 0.0
    %586 = vmatprep.subr.mxu0 0.0
    %587 = vmatpush2.msra.mxu0 0.0
    %588 = vmatprep.mubr.f32.mxu0 0.0
    %589 = vmatmul.mubr.f32.gmra.mxu0 %v523
    %v590 = vpop.f32.mrf.mxu0
    %v591 = vadd.f32 0.0, %v590
    %v592 = vpop.f32.mrf.mxu0
    %593 = vdwg.mxu0
    %v595 = vrot.slane %v591, 5
    %v596 = vrot.slane %v591, 6
    %v599 = vadd.f32 %v138, %v595
    %v600 = vadd.f32 %v143, %v596
    %v601 = vtanh.pop %v599
    %v602 = vtanh.pop %v600
    %v603 = vxor.u32 %v599, 2147483648
    %v604 = vxor.u32 %v600, 2147483648
    %v605 = vmul.f32 %v603, 1.442695
    %v606 = vpow.pop %v605
    %v607 = vmul.f32 %v604, 1.442695
    %v608 = vpow.pop %v607
    %v609 = vadd.f32 %v606, 1.0
    %v610 = vadd.f32 %v608, 1.0
    %v611 = vrcp.pop %v609
    %v612 = vmul.f32 1.0, %v611
    %v613 = vrcp.pop %v610
    %v614 = vmul.f32 1.0, %v613
    %v617 = vrot.slane %v601, 3
    %v618 = vrot.slane %v602, 2
    %v619 = vsel %vm277, %v618, %v617
    %v623 = vrot.slane %v612, 3
    %v624 = vrot.slane %v614, 2
    %v625 = vsel %vm277, %v624, %v623
    %v627 = vsel %vm166, %v619, %v625
    %628 = vrot.lane.b32.xlu0 %v627, 64
    %v629 = vpop.permute.xlu0 %628
    %v630 = vmul.f32 %v627, %v629
    %v631 = vmul.f32 %v627, %v519
    %632 = vrot.lane.b32.xlu0 %v630, 32
    %v633 = vpop.permute.xlu0 %632
    %v634 = vadd.f32 %v631, %v633
    %635 = vrot.lane.b32.xlu0 %v634, 64
    %v636 = vpop.permute.xlu0 %635
    %v637 = vtanh.pop %v636
    %v638 = vmul.f32 %v627, %v637
    %639 = vmatprep.subr.mxu0 0.0
    %640 = vmatpush1.msra.mxu0 %v161
    %641 = vmatprep.subr.mxu0 0.0
    %642 = vmatpush1.msra.mxu0 %v160
    %643 = vmatprep.subr.mxu0 0.0
    %644 = vmatpush1.msra.mxu0 %v159
    %645 = vmatprep.subr.mxu0 0.0
    %646 = vmatpush1.msra.mxu0 %v158
    %647 = vmatprep.subr.mxu0 0.0
    %648 = vmatpush1.msra.mxu0 %v157
    %649 = vmatprep.subr.mxu0 0.0
    %650 = vmatpush1.msra.mxu0 %v156
    %651 = vmatprep.subr.mxu0 0.0
    %652 = vmatpush1.msra.mxu0 %v155
    %653 = vmatprep.subr.mxu0 0.0
    %654 = vmatpush1.msra.mxu0 %v154
    %655 = vmatprep.subr.mxu0 0.0
    %656 = vmatpush1.msra.mxu0 %v153
    %657 = vmatprep.subr.mxu0 0.0
    %658 = vmatpush1.msra.mxu0 %v152
    %659 = vmatprep.subr.mxu0 0.0
    %660 = vmatpush1.msra.mxu0 %v151
    %661 = vmatprep.subr.mxu0 0.0
    %662 = vmatpush1.msra.mxu0 %v150
    %663 = vmatprep.subr.mxu0 0.0
    %664 = vmatpush1.msra.mxu0 %v149
    %665 = vmatprep.subr.mxu0 0.0
    %666 = vmatpush1.msra.mxu0 %v148
    %667 = vmatprep.subr.mxu0 0.0
    %668 = vmatpush1.msra.mxu0 %v147
    %669 = vmatprep.subr.mxu0 0.0
    %670 = vmatpush1.msra.mxu0 %v146
    %671 = vmatprep.subr.mxu0 0.0
    %672 = vmatpush2.msra.mxu0 0.0
    %673 = vmatprep.subr.mxu0 0.0
    %674 = vmatpush2.msra.mxu0 0.0
    %675 = vmatprep.subr.mxu0 0.0
    %676 = vmatpush2.msra.mxu0 0.0
    %677 = vmatprep.subr.mxu0 0.0
    %678 = vmatpush2.msra.mxu0 0.0
    %679 = vmatprep.subr.mxu0 0.0
    %680 = vmatpush2.msra.mxu0 0.0
    %681 = vmatprep.subr.mxu0 0.0
    %682 = vmatpush2.msra.mxu0 0.0
    %683 = vmatprep.subr.mxu0 0.0
    %684 = vmatpush2.msra.mxu0 0.0
    %685 = vmatprep.subr.mxu0 0.0
    %686 = vmatpush2.msra.mxu0 0.0
    %687 = vmatprep.subr.mxu0 0.0
    %688 = vmatpush2.msra.mxu0 0.0
    %689 = vmatprep.subr.mxu0 0.0
    %690 = vmatpush2.msra.mxu0 0.0
    %691 = vmatprep.subr.mxu0 0.0
    %692 = vmatpush2.msra.mxu0 0.0
    %693 = vmatprep.subr.mxu0 0.0
    %694 = vmatpush2.msra.mxu0 0.0
    %695 = vmatprep.subr.mxu0 0.0
    %696 = vmatpush2.msra.mxu0 0.0
    %697 = vmatprep.subr.mxu0 0.0
    %698 = vmatpush2.msra.mxu0 0.0
    %699 = vmatprep.subr.mxu0 0.0
    %700 = vmatpush2.msra.mxu0 0.0
    %701 = vmatprep.subr.mxu0 0.0
    %702 = vmatpush2.msra.mxu0 0.0
    %703 = vmatprep.mubr.f32.mxu0 0.0
    %704 = vmatmul.mubr.f32.gmra.mxu0 %v638
    %v705 = vpop.f32.mrf.mxu0
    %v706 = vadd.f32 0.0, %v705
    %v707 = vpop.f32.mrf.mxu0
    %708 = vdwg.mxu0
    %v710 = vrot.slane %v706, 4
    %v711 = vrot.slane %v706, 5
    %v714 = vadd.f32 %v138, %v710
    %v715 = vadd.f32 %v143, %v711
    %v716 = vtanh.pop %v714
    %v717 = vtanh.pop %v715
    %v718 = vxor.u32 %v714, 2147483648
    %v719 = vxor.u32 %v715, 2147483648
    %v720 = vmul.f32 %v718, 1.442695
    %v721 = vpow.pop %v720
    %v722 = vmul.f32 %v719, 1.442695
    %v723 = vpow.pop %v722
    %v724 = vadd.f32 %v721, 1.0
    %v725 = vadd.f32 %v723, 1.0
    %v726 = vrcp.pop %v724
    %v727 = vmul.f32 1.0, %v726
    %v728 = vrcp.pop %v725
    %v729 = vmul.f32 1.0, %v728
    %v732 = vrot.slane %v716, 4
    %v733 = vrot.slane %v717, 3
    %v734 = vsel %vm277, %v733, %v732
    %v738 = vrot.slane %v727, 4
    %v739 = vrot.slane %v729, 3
    %v740 = vsel %vm277, %v739, %v738
    %v742 = vsel %vm166, %v734, %v740
    %743 = vrot.lane.b32.xlu0 %v742, 64
    %v744 = vpop.permute.xlu0 %743
    %v745 = vmul.f32 %v742, %v744
    %v746 = vmul.f32 %v742, %v634
    %747 = vrot.lane.b32.xlu0 %v745, 32
    %v748 = vpop.permute.xlu0 %747
    %v749 = vadd.f32 %v746, %v748
    %750 = vrot.lane.b32.xlu0 %v749, 64
    %v751 = vpop.permute.xlu0 %750
    %v752 = vtanh.pop %v751
    %v753 = vmul.f32 %v742, %v752
    %754 = vmatprep.subr.mxu0 0.0
    %755 = vmatpush1.msra.mxu0 %v161
    %756 = vmatprep.subr.mxu0 0.0
    %757 = vmatpush1.msra.mxu0 %v160
    %758 = vmatprep.subr.mxu0 0.0
    %759 = vmatpush1.msra.mxu0 %v159
    %760 = vmatprep.subr.mxu0 0.0
    %761 = vmatpush1.msra.mxu0 %v158
    %762 = vmatprep.subr.mxu0 0.0
    %763 = vmatpush1.msra.mxu0 %v157
    %764 = vmatprep.subr.mxu0 0.0
    %765 = vmatpush1.msra.mxu0 %v156
    %766 = vmatprep.subr.mxu0 0.0
    %767 = vmatpush1.msra.mxu0 %v155
    %768 = vmatprep.subr.mxu0 0.0
    %769 = vmatpush1.msra.mxu0 %v154
    %770 = vmatprep.subr.mxu0 0.0
    %771 = vmatpush1.msra.mxu0 %v153
    %772 = vmatprep.subr.mxu0 0.0
    %773 = vmatpush1.msra.mxu0 %v152
    %774 = vmatprep.subr.mxu0 0.0
    %775 = vmatpush1.msra.mxu0 %v151
    %776 = vmatprep.subr.mxu0 0.0
    %777 = vmatpush1.msra.mxu0 %v150
    %778 = vmatprep.subr.mxu0 0.0
    %779 = vmatpush1.msra.mxu0 %v149
    %780 = vmatprep.subr.mxu0 0.0
    %781 = vmatpush1.msra.mxu0 %v148
    %782 = vmatprep.subr.mxu0 0.0
    %783 = vmatpush1.msra.mxu0 %v147
    %784 = vmatprep.subr.mxu0 0.0
    %785 = vmatpush1.msra.mxu0 %v146
    %786 = vmatprep.subr.mxu0 0.0
    %787 = vmatpush2.msra.mxu0 0.0
    %788 = vmatprep.subr.mxu0 0.0
    %789 = vmatpush2.msra.mxu0 0.0
    %790 = vmatprep.subr.mxu0 0.0
    %791 = vmatpush2.msra.mxu0 0.0
    %792 = vmatprep.subr.mxu0 0.0
    %793 = vmatpush2.msra.mxu0 0.0
    %794 = vmatprep.subr.mxu0 0.0
    %795 = vmatpush2.msra.mxu0 0.0
    %796 = vmatprep.subr.mxu0 0.0
    %797 = vmatpush2.msra.mxu0 0.0
    %798 = vmatprep.subr.mxu0 0.0
    %799 = vmatpush2.msra.mxu0 0.0
    %800 = vmatprep.subr.mxu0 0.0
    %801 = vmatpush2.msra.mxu0 0.0
    %802 = vmatprep.subr.mxu0 0.0
    %803 = vmatpush2.msra.mxu0 0.0
    %804 = vmatprep.subr.mxu0 0.0
    %805 = vmatpush2.msra.mxu0 0.0
    %806 = vmatprep.subr.mxu0 0.0
    %807 = vmatpush2.msra.mxu0 0.0
    %808 = vmatprep.subr.mxu0 0.0
    %809 = vmatpush2.msra.mxu0 0.0
    %810 = vmatprep.subr.mxu0 0.0
    %811 = vmatpush2.msra.mxu0 0.0
    %812 = vmatprep.subr.mxu0 0.0
    %813 = vmatpush2.msra.mxu0 0.0
    %814 = vmatprep.subr.mxu0 0.0
    %815 = vmatpush2.msra.mxu0 0.0
    %816 = vmatprep.subr.mxu0 0.0
    %817 = vmatpush2.msra.mxu0 0.0
    %818 = vmatprep.mubr.f32.mxu0 0.0
    %819 = vmatmul.mubr.f32.gmra.mxu0 %v753
    %v820 = vpop.f32.mrf.mxu0
    %v821 = vadd.f32 0.0, %v820
    %v822 = vpop.f32.mrf.mxu0
    %823 = vdwg.mxu0
    %v825 = vrot.slane %v821, 3
    %v826 = vrot.slane %v821, 4
    %v829 = vadd.f32 %v138, %v825
    %v830 = vadd.f32 %v143, %v826
    %v831 = vtanh.pop %v829
    %v832 = vtanh.pop %v830
    %v833 = vxor.u32 %v829, 2147483648
    %v834 = vxor.u32 %v830, 2147483648
    %v835 = vmul.f32 %v833, 1.442695
    %v836 = vpow.pop %v835
    %v837 = vmul.f32 %v834, 1.442695
    %v838 = vpow.pop %v837
    %v839 = vadd.f32 %v836, 1.0
    %v840 = vadd.f32 %v838, 1.0
    %v841 = vrcp.pop %v839
    %v842 = vmul.f32 1.0, %v841
    %v843 = vrcp.pop %v840
    %v844 = vmul.f32 1.0, %v843
    %v847 = vrot.slane %v831, 5
    %v848 = vrot.slane %v832, 4
    %v849 = vsel %vm277, %v848, %v847
    %v853 = vrot.slane %v842, 5
    %v854 = vrot.slane %v844, 4
    %v855 = vsel %vm277, %v854, %v853
    %v857 = vsel %vm166, %v849, %v855
    %858 = vrot.lane.b32.xlu0 %v857, 64
    %v859 = vpop.permute.xlu0 %858
    %v860 = vmul.f32 %v857, %v859
    %v861 = vmul.f32 %v857, %v749
    %862 = vrot.lane.b32.xlu0 %v860, 32
    %v863 = vpop.permute.xlu0 %862
    %v864 = vadd.f32 %v861, %v863
    %865 = vrot.lane.b32.xlu0 %v864, 64
    %v866 = vpop.permute.xlu0 %865
    %v867 = vtanh.pop %v866
    %v868 = vmul.f32 %v857, %v867
    %869 = vmatprep.subr.mxu0 0.0
    %870 = vmatpush1.msra.mxu0 %v161
    %871 = vmatprep.subr.mxu0 0.0
    %872 = vmatpush1.msra.mxu0 %v160
    %873 = vmatprep.subr.mxu0 0.0
    %874 = vmatpush1.msra.mxu0 %v159
    %875 = vmatprep.subr.mxu0 0.0
    %876 = vmatpush1.msra.mxu0 %v158
    %877 = vmatprep.subr.mxu0 0.0
    %878 = vmatpush1.msra.mxu0 %v157
    %879 = vmatprep.subr.mxu0 0.0
    %880 = vmatpush1.msra.mxu0 %v156
    %881 = vmatprep.subr.mxu0 0.0
    %882 = vmatpush1.msra.mxu0 %v155
    %883 = vmatprep.subr.mxu0 0.0
    %884 = vmatpush1.msra.mxu0 %v154
    %885 = vmatprep.subr.mxu0 0.0
    %886 = vmatpush1.msra.mxu0 %v153
    %887 = vmatprep.subr.mxu0 0.0
    %888 = vmatpush1.msra.mxu0 %v152
    %889 = vmatprep.subr.mxu0 0.0
    %890 = vmatpush1.msra.mxu0 %v151
    %891 = vmatprep.subr.mxu0 0.0
    %892 = vmatpush1.msra.mxu0 %v150
    %893 = vmatprep.subr.mxu0 0.0
    %894 = vmatpush1.msra.mxu0 %v149
    %895 = vmatprep.subr.mxu0 0.0
    %896 = vmatpush1.msra.mxu0 %v148
    %897 = vmatprep.subr.mxu0 0.0
    %898 = vmatpush1.msra.mxu0 %v147
    %899 = vmatprep.subr.mxu0 0.0
    %900 = vmatpush1.msra.mxu0 %v146
    %901 = vmatprep.subr.mxu0 0.0
    %902 = vmatpush2.msra.mxu0 0.0
    %903 = vmatprep.subr.mxu0 0.0
    %904 = vmatpush2.msra.mxu0 0.0
    %905 = vmatprep.subr.mxu0 0.0
    %906 = vmatpush2.msra.mxu0 0.0
    %907 = vmatprep.subr.mxu0 0.0
    %908 = vmatpush2.msra.mxu0 0.0
    %909 = vmatprep.subr.mxu0 0.0
    %910 = vmatpush2.msra.mxu0 0.0
    %911 = vmatprep.subr.mxu0 0.0
    %912 = vmatpush2.msra.mxu0 0.0
    %913 = vmatprep.subr.mxu0 0.0
    %914 = vmatpush2.msra.mxu0 0.0
    %915 = vmatprep.subr.mxu0 0.0
    %916 = vmatpush2.msra.mxu0 0.0
    %917 = vmatprep.subr.mxu0 0.0
    %918 = vmatpush2.msra.mxu0 0.0
    %919 = vmatprep.subr.mxu0 0.0
    %920 = vmatpush2.msra.mxu0 0.0
    %921 = vmatprep.subr.mxu0 0.0
    %922 = vmatpush2.msra.mxu0 0.0
    %923 = vmatprep.subr.mxu0 0.0
    %924 = vmatpush2.msra.mxu0 0.0
    %925 = vmatprep.subr.mxu0 0.0
    %926 = vmatpush2.msra.mxu0 0.0
    %927 = vmatprep.subr.mxu0 0.0
    %928 = vmatpush2.msra.mxu0 0.0
    %929 = vmatprep.subr.mxu0 0.0
    %930 = vmatpush2.msra.mxu0 0.0
    %931 = vmatprep.subr.mxu0 0.0
    %932 = vmatpush2.msra.mxu0 0.0
    %933 = vmatprep.mubr.f32.mxu0 0.0
    %934 = vmatmul.mubr.f32.gmra.mxu0 %v868
    %v935 = vpop.f32.mrf.mxu0
    %v936 = vadd.f32 0.0, %v935
    %v937 = vpop.f32.mrf.mxu0
    %938 = vdwg.mxu0
    %v940 = vrot.slane %v936, 2
    %v941 = vrot.slane %v936, 3
    %v944 = vadd.f32 %v138, %v940
    %v945 = vadd.f32 %v143, %v941
    %v946 = vtanh.pop %v944
    %v947 = vtanh.pop %v945
    %v948 = vxor.u32 %v944, 2147483648
    %v949 = vxor.u32 %v945, 2147483648
    %v950 = vmul.f32 %v948, 1.442695
    %v951 = vpow.pop %v950
    %v952 = vmul.f32 %v949, 1.442695
    %v953 = vpow.pop %v952
    %v954 = vadd.f32 %v951, 1.0
    %v955 = vadd.f32 %v953, 1.0
    %v956 = vrcp.pop %v954
    %v957 = vmul.f32 1.0, %v956
    %v958 = vrcp.pop %v955
    %v959 = vmul.f32 1.0, %v958
    %v962 = vrot.slane %v946, 6
    %v963 = vrot.slane %v947, 5
    %v964 = vsel %vm277, %v963, %v962
    %v968 = vrot.slane %v957, 6
    %v969 = vrot.slane %v959, 5
    %v970 = vsel %vm277, %v969, %v968
    %v972 = vsel %vm166, %v964, %v970
    %973 = vrot.lane.b32.xlu0 %v972, 64
    %v974 = vpop.permute.xlu0 %973
    %v975 = vmul.f32 %v972, %v974
    %v976 = vmul.f32 %v972, %v864
    %977 = vrot.lane.b32.xlu0 %v975, 32
    %v978 = vpop.permute.xlu0 %977
    %v979 = vadd.f32 %v976, %v978
    %980 = vrot.lane.b32.xlu0 %v979, 64
    %v981 = vpop.permute.xlu0 %980
    %v982 = vtanh.pop %v981
    %v983 = vmul.f32 %v972, %v982
    %984 = vmatprep.subr.mxu0 0.0
    %985 = vmatpush1.msra.mxu0 %v161
    %986 = vmatprep.subr.mxu0 0.0
    %987 = vmatpush1.msra.mxu0 %v160
    %988 = vmatprep.subr.mxu0 0.0
    %989 = vmatpush1.msra.mxu0 %v159
    %990 = vmatprep.subr.mxu0 0.0
    %991 = vmatpush1.msra.mxu0 %v158
    %992 = vmatprep.subr.mxu0 0.0
    %993 = vmatpush1.msra.mxu0 %v157
    %994 = vmatprep.subr.mxu0 0.0
    %995 = vmatpush1.msra.mxu0 %v156
    %996 = vmatprep.subr.mxu0 0.0
    %997 = vmatpush1.msra.mxu0 %v155
    %998 = vmatprep.subr.mxu0 0.0
    %999 = vmatpush1.msra.mxu0 %v154
    %1000 = vmatprep.subr.mxu0 0.0
    %1001 = vmatpush1.msra.mxu0 %v153
    %1002 = vmatprep.subr.mxu0 0.0
    %1003 = vmatpush1.msra.mxu0 %v152
    %1004 = vmatprep.subr.mxu0 0.0
    %1005 = vmatpush1.msra.mxu0 %v151
    %1006 = vmatprep.subr.mxu0 0.0
    %1007 = vmatpush1.msra.mxu0 %v150
    %1008 = vmatprep.subr.mxu0 0.0
    %1009 = vmatpush1.msra.mxu0 %v149
    %1010 = vmatprep.subr.mxu0 0.0
    %1011 = vmatpush1.msra.mxu0 %v148
    %1012 = vmatprep.subr.mxu0 0.0
    %1013 = vmatpush1.msra.mxu0 %v147
    %1014 = vmatprep.subr.mxu0 0.0
    %1015 = vmatpush1.msra.mxu0 %v146
    %1016 = vmatprep.subr.mxu0 0.0
    %1017 = vmatpush2.msra.mxu0 0.0
    %1018 = vmatprep.subr.mxu0 0.0
    %1019 = vmatpush2.msra.mxu0 0.0
    %1020 = vmatprep.subr.mxu0 0.0
    %1021 = vmatpush2.msra.mxu0 0.0
    %1022 = vmatprep.subr.mxu0 0.0
    %1023 = vmatpush2.msra.mxu0 0.0
    %1024 = vmatprep.subr.mxu0 0.0
    %1025 = vmatpush2.msra.mxu0 0.0
    %1026 = vmatprep.subr.mxu0 0.0
    %1027 = vmatpush2.msra.mxu0 0.0
    %1028 = vmatprep.subr.mxu0 0.0
    %1029 = vmatpush2.msra.mxu0 0.0
    %1030 = vmatprep.subr.mxu0 0.0
    %1031 = vmatpush2.msra.mxu0 0.0
    %1032 = vmatprep.subr.mxu0 0.0
    %1033 = vmatpush2.msra.mxu0 0.0
    %1034 = vmatprep.subr.mxu0 0.0
    %1035 = vmatpush2.msra.mxu0 0.0
    %1036 = vmatprep.subr.mxu0 0.0
    %1037 = vmatpush2.msra.mxu0 0.0
    %1038 = vmatprep.subr.mxu0 0.0
    %1039 = vmatpush2.msra.mxu0 0.0
    %1040 = vmatprep.subr.mxu0 0.0
    %1041 = vmatpush2.msra.mxu0 0.0
    %1042 = vmatprep.subr.mxu0 0.0
    %1043 = vmatpush2.msra.mxu0 0.0
    %1044 = vmatprep.subr.mxu0 0.0
    %1045 = vmatpush2.msra.mxu0 0.0
    %1046 = vmatprep.subr.mxu0 0.0
    %1047 = vmatpush2.msra.mxu0 0.0
    %1048 = vmatprep.mubr.f32.mxu0 0.0
    %1049 = vmatmul.mubr.f32.gmra.mxu0 %v983
    %v1050 = vpop.f32.mrf.mxu0
    %v1051 = vadd.f32 0.0, %v1050
    %v1052 = vpop.f32.mrf.mxu0
    %1053 = vdwg.mxu0
    %v1055 = vrot.slane %v1051, 1
    %v1056 = vrot.slane %v1051, 2
    %v1059 = vadd.f32 %v138, %v1055
    %v1060 = vadd.f32 %v143, %v1056
    %v1061 = vtanh.pop %v1059
    %v1062 = vtanh.pop %v1060
    %v1063 = vxor.u32 %v1059, 2147483648
    %v1064 = vxor.u32 %v1060, 2147483648
    %v1065 = vmul.f32 %v1063, 1.442695
    %v1066 = vpow.pop %v1065
    %v1067 = vmul.f32 %v1064, 1.442695
    %v1068 = vpow.pop %v1067
    %v1069 = vadd.f32 %v1066, 1.0
    %v1070 = vadd.f32 %v1068, 1.0
    %v1071 = vrcp.pop %v1069
    %v1072 = vmul.f32 1.0, %v1071
    %v1073 = vrcp.pop %v1070
    %v1074 = vmul.f32 1.0, %v1073
    %v1077 = vrot.slane %v1061, 7
    %v1078 = vrot.slane %v1062, 6
    %v1079 = vsel %vm277, %v1078, %v1077
    %v1083 = vrot.slane %v1072, 7
    %v1084 = vrot.slane %v1074, 6
    %v1085 = vsel %vm277, %v1084, %v1083
    %v1087 = vsel %vm166, %v1079, %v1085
    %1088 = vrot.lane.b32.xlu0 %v1087, 64
    %v1089 = vpop.permute.xlu0 %1088
    %v1090 = vmul.f32 %v1087, %v1089
    %v1091 = vmul.f32 %v1087, %v979
    %1092 = vrot.lane.b32.xlu0 %v1090, 32
    %v1093 = vpop.permute.xlu0 %1092
    %v1094 = vadd.f32 %v1091, %v1093
    %1095 = vrot.lane.b32.xlu0 %v1094, 64
    %v1096 = vpop.permute.xlu0 %1095
    %v1097 = vtanh.pop %v1096
    %v1098 = vmul.f32 %v1087, %v1097
    %1100 = vrot.lane.b32.xlu0 %v1098, 32
    %v1101 = vpop.permute.xlu0 %1100
    %vm1103 = vcmask 254976
    %1104 = vst.msk [vmem:[#allocation6] sm:$0x3] %vm1103, %v1101
    %1106 = vrot.lane.b32.xlu0 %v1094, 96
    %v1107 = vpop.permute.xlu0 %1106
    %1109 = vst.msk [vmem:[#allocation7] sm:$0x3] %vm1103, %v1107
    %v1110 = vld [vmem:[%s4] sm:$0x1]
    %v1112 = vlaneseq
    %v1113 = vshrl.u32 %v1112, 7
    %v1114 = vsub.s32 0, %v1113
    %v1115 = vrot.slane %v1110, %v1114
    %1116 = vrot.lane.b32.xlu0 %v1115, 96
    %v1117 = vpop.permute.xlu0 %1116
    %v1119 = vmul.f32 %v1098, %v1117
    %1121 = vrot.lane.b32.xlu0 %v1119, 32
    %v1122 = vpop.permute.xlu0 %1121
    %v1124 = vsel %vm1103, %v1122, 0.0
    %1125 = vadd.xlane.f32.xlu0 %v1124
    %v1126 = vpop.xlane.xlu0 %1125
    %v1127 = vld [vmem:[#allocation2] sm:$0x1]
    %v1129 = vlaneseq
    %v1130 = vshrl.u32 %v1129, 7
    %v1131 = vsub.s32 0, %v1130
    %v1132 = vrot.slane %v1127, %v1131
    %v1134 = vadd.f32 %v1126, %v1132
    %vm1135 = vcmask 1024
    %1136 = vst.msk [vmem:[%s8] sm:$0x3] %vm1135, %v1134
    // Predicated region
    $region38: #{lstm_net_forward.1} parent=1 // pred_check
      _
    $region39: #{lstm_net_forward.1} parent=1 // pred_check_branch
      %1138 = sbr.rel (0) target = $region41
    $region40: #{lstm_net_forward.1} parent=1 // pred_region
      _
    $region41: #{lstm_net_forward.1} parent=1 // pred_fallthru
      _
    // Predicated region
    $region42: #{lstm_net_forward.1} parent=1 // pred_check
      _
    $region43: #{lstm_net_forward.1} parent=1 // pred_check_branch
      %1140 = sbr.rel (0) target = $region45
    $region44: #{lstm_net_forward.1} parent=1 // pred_region
      %s1142 = ssub.s32 32, 32
      %1143 = vsyncadd [#allocation5], %s1142
      %s1145 = sshll.u32 [#allocation6], 4
      %s1146 = int_to_ptr.vmem [resolvable:$true] %s1145
      %1148 = dma.vmem_to_hbm [thread:$0]  %s1146, 32, %s9, [#allocation5]
    $region45: #{lstm_net_forward.1} parent=1 // pred_fallthru
      _
    // Predicated region
    $region46: #{lstm_net_forward.1} parent=1 // pred_check
      _
    $region47: #{lstm_net_forward.1} parent=1 // pred_check_branch
      %1150 = sbr.rel (0) target = $region49
    $region48: #{lstm_net_forward.1} parent=1 // pred_region
      %s1152 = ssub.s32 32, 32
      %1153 = vsyncadd [#allocation8], %s1152
      %s1155 = sshll.u32 [#allocation7], 4
      %s1156 = int_to_ptr.vmem [resolvable:$true] %s1155
      %1158 = dma.vmem_to_hbm [thread:$0]  %s1156, 32, %s10, [#allocation8]
    $region49: #{lstm_net_forward.1} parent=1 // pred_fallthru
      _
    // Predicated region
    $region50: #{lstm_net_forward.1} parent=1 // pred_check
      _
    $region51: #{lstm_net_forward.1} parent=1 // pred_check_branch
      %1160 = sbr.rel (0) target = $region53
    $region52: #{lstm_net_forward.1} parent=1 // pred_region
      _
    $region53: #{lstm_net_forward.1} parent=1 // pred_fallthru
      _
    // Predicated region
    $region54: #{lstm_net_forward.1} parent=1 // pred_check
      _
    $region55: #{lstm_net_forward.1} parent=1 // pred_check_branch
      %1162 = sbr.rel (0) target = $region57
    $region56: #{lstm_net_forward.1} parent=1 // pred_region
      %1163 = dma.done [#allocation5], 32
    $region57: #{lstm_net_forward.1} parent=1 // pred_fallthru
      _
    // Predicated region
    $region58: #{lstm_net_forward.1} parent=1 // pred_check
      _
    $region59: #{lstm_net_forward.1} parent=1 // pred_check_branch
      %1165 = sbr.rel (0) target = $region61
    $region60: #{lstm_net_forward.1} parent=1 // pred_region
      %1166 = dma.done [#allocation8], 32
    $region61: #{lstm_net_forward.1} parent=1 // pred_fallthru
      _
    %1167 = vsyncpa [#allocation4], 1
    %1168 = vsyncpa [#allocation5], 1
    %1169 = vsyncpa [#allocation8], 1

</llo_original>
